<compile_context>
chip_gen: v7x
topology: tpu7x:2x2x1
jax: 0.10.0
libtpu: 0.0.40
codegen_flags: <defaults>
</compile_context>

<pallas_src>
import math

import jax
import jax.numpy as jnp
from jax.experimental import pallas as pl
from jax.experimental.pallas import tpu as pltpu


def _make_kernel(batch_tile, n, compute_dtype):
    """Kernel processing `batch_tile` batches (batch_tile * n feature rows) per step."""
    m1 = batch_tile * n  # rows per path per grid step

    def kernel(a_ref, fj_ref, fm_ref, w1_ref, b1_ref, w2_ref, out_ref):
        a = a_ref[...]                                  # (M1, D) f32 reference features
        fj = fj_ref[...]                                # (M1, D) f32 joint features
        fm = fm_ref[...]                                # (M1, D) f32 marginal (permuted) features
        w1 = w1_ref[...].astype(compute_dtype)          # (D, H)
        b1 = b1_ref[...]                                # (1, H) f32
        w2 = w2_ref[...]                                # (1, H) f32 row form of (H, 1) projection

        # --- symm_module stand-in: elementwise symmetric combine a*x + a + x.
        sj = a * fj + a + fj                            # (M1, D) joint combine
        sm = a * fm + a + fm                            # (M1, D) marginal combine

        # --- decoder layer 1: two M=M1 dots sharing the resident w1 (no concatenate),
        #     optionally bf16 inputs with f32 accumulation.
        hj = jnp.dot(sj.astype(compute_dtype), w1,
                     preferred_element_type=jnp.float32) + b1            # (M1, H)
        hm = jnp.dot(sm.astype(compute_dtype), w1,
                     preferred_element_type=jnp.float32) + b1            # (M1, H)
        hj = jnp.maximum(hj, 0.0)
        hm = jnp.maximum(hm, 0.0)

        # --- decoder layer 2 (H->1) on the VPU (mul + lane reduce), keeping N on the
        #     lane axis for the per-batch summary reductions.  The final bias b2
        #     cancels exactly in -mean(join) + logsumexp(marg) and is dropped.
        w2b = w2.reshape(1, 1, -1)                                       # (1, 1, H)
        scj = jnp.sum(hj.reshape(batch_tile, n, -1) * w2b, axis=-1)      # (BT, N)
        scm = jnp.sum(hm.reshape(batch_tile, n, -1) * w2b, axis=-1)      # (BT, N)

        # --- MineSummary: per-batch mean / stabilized logsumexp over N (lane reduces).
        t = jnp.mean(scj, axis=-1)                                       # (BT,)
        mx = jnp.max(scm, axis=-1, keepdims=True)                        # (BT, 1)
        sumexp = jnp.sum(jnp.exp(scm - mx), axis=-1)                     # (BT,)
        lse = mx.reshape(batch_tile) + jnp.log(sumexp)                   # (BT,)

        res = -t + lse - math.log(n)                                     # (BT,)
        out_ref[...] = res.reshape(1, 1, batch_tile).astype(out_ref.dtype)

    return kernel


def _pick_batch_tile(B, N, D, H):
    """Generation-aware batch tile: VMEM-bounded, megacore-friendly."""
    # Valid tiles: divisors of B with BT*N a multiple of 8 sublanes.
    cands = [d for d in range(1, B + 1) if B % d == 0 and (d * N) % 8 == 0]
    if not cands:
        raise ValueError("no batch tile with batch_tile * N a multiple of 8")

    # Per-step VMEM estimate: 3 double-buffered (M1, D) feature inputs + f32
    # activations for both paths.  Keep well under v7x's 32 MiB scoped default.
    def vmem_bytes(bt):
        m1 = bt * N
        return 3 * 2 * m1 * D * 4 + 2 * m1 * (D + H) * 4 + 2 * m1 * H * 4

    fit = [d for d in cands if vmem_bytes(d) <= 8 * 1024 * 1024] or [min(cands)]

    try:
        kind = jax.devices()[0].device_kind.lower()
    except Exception:  # pragma: no cover - defensive
        kind = ""
    single_tc = any(t in kind for t in ("v5e", "v5 lite", "v5lite", "v6e", "v6 lite"))

    if single_tc:
        # Latency-bound at these sizes: one fused grid step removes per-step overhead.
        return max(fit)
    # Dual-TensorCore generations (v7x): keep an even number (>=2) of "parallel"
    # grid steps so both TensorCores get work.
    even = [d for d in fit if (B // d) >= 2 and (B // d) % 2 == 0]
    if even:
        return max(even)
    multi = [d for d in fit if (B // d) >= 2]
    return max(multi) if multi else max(fit)


def main_decoder_forward(f_ref, f, params, key, *, batch_tile=None,
                         compute_dtype=jnp.float32):
    """Pallas implementation of MainDecoder.forward.

    f_ref, f : (B, N, D) float32
    returns  : (B,) float32 MINE estimate, plus the permutation indices used.
    """
    B, N, D = f.shape
    w1, b1, w2, b2 = params
    del b2  # cancels algebraically in -mean(join) + logsumexp(marg)
    H = w1.shape[1]

    if batch_tile is None:
        batch_tile = _pick_batch_tile(B, N, D, H)
    BT = batch_tile
    assert B % BT == 0, "batch_tile must divide the batch size"
    assert (BT * N) % 8 == 0, "row tile must be a multiple of 8 sublanes"
    M1 = BT * N
    steps = B // BT

    # Glue (matches torch.rand + argsort): per-batch random permutation indices,
    # applied as a gather in the wrapper (negligible, fully pipelined HBM traffic).
    r = jax.random.uniform(key, (B, N))
    indices = jnp.argsort(r, axis=1).astype(jnp.int32)                   # (B, N)
    f_marg = jnp.take_along_axis(f, indices[:, :, None], axis=1)         # (B, N, D)

    f_ref2 = f_ref.reshape(B * N, D)
    f2 = f.reshape(B * N, D)
    fm2 = f_marg.reshape(B * N, D)
    w2_row = w2.reshape(1, H)

    # Deeper input pipelining only pays once the grid is deep enough.
    feat_kwargs = dict(pipeline_mode=pl.Buffered(3)) if steps >= 3 else {}

    def feat_spec():
        return pl.BlockSpec((M1, D), lambda g: (g, 0), **feat_kwargs)

    kernel = _make_kernel(BT, N, compute_dtype)
    out = pl.pallas_call(
        kernel,
        out_shape=jax.ShapeDtypeStruct((steps, 1, BT), jnp.float32),
        grid=(steps,),
        in_specs=[
            feat_spec(),                               # f_ref rows
            feat_spec(),                               # f rows (joint)
            feat_spec(),                               # f_marg rows (marginal)
            pl.BlockSpec((D, H), lambda g: (0, 0)),    # w1 (resident)
            pl.BlockSpec((1, H), lambda g: (0, 0)),    # b1
            pl.BlockSpec((1, H), lambda g: (0, 0)),    # w2 (row form)
        ],
        out_specs=pl.BlockSpec((1, 1, BT), lambda g: (g, 0, 0)),
        compiler_params=pltpu.CompilerParams(dimension_semantics=("parallel",)),
    )(f_ref2, f2, fm2, w1, b1, w2_row)

    return out.reshape(B), indices


def _reference_forward(f_ref, f, indices, params, compute_dtype=jnp.float32):
    """Pure-JAX reference mirroring the PyTorch module (same permutation)."""
    w1, b1, w2, b2 = params
    f_marg = jnp.take_along_axis(f, indices[:, :, None], axis=1)

    def symm(a, b):
        return a * b + a + b

    def decoder(x):
        h = jnp.einsum("bnd,dh->bnh", x.astype(compute_dtype),
                       w1.astype(compute_dtype),
                       preferred_element_type=jnp.float32) + b1[None]
        h = jnp.maximum(h, 0.0)
        return (jnp.einsum("bnh,ho->bno", h, w2) + b2[None])[..., 0]     # (B, N)

    out_join = decoder(symm(f_ref, f))
    out_marg = decoder(symm(f_ref, f_marg))
    t = jnp.mean(out_join, axis=1)
    t_marg = jax.nn.logsumexp(out_marg, axis=1) - jnp.log(
        jnp.asarray(out_marg.shape[1], jnp.float32))
    return -t + t_marg


if __name__ == "__main__":
    # H chosen as a multiple of 128 per perf guidance (lane-dense hidden layer).
    B, N, D, H = 16, 16, 32, 128

    key = jax.random.PRNGKey(0)
    k_fref, k_f, k_w1, k_b1, k_w2, k_b2, k_perm = jax.random.split(key, 7)

    f_ref = jax.random.normal(k_fref, (B, N, D), dtype=jnp.float32)
    f = jax.random.normal(k_f, (B, N, D), dtype=jnp.float32)

    w1 = jax.random.normal(k_w1, (D, H), dtype=jnp.float32) * (1.0 / math.sqrt(D))
    b1 = jax.random.normal(k_b1, (1, H), dtype=jnp.float32) * 0.01
    w2 = jax.random.normal(k_w2, (H, 1), dtype=jnp.float32) * (1.0 / math.sqrt(H))
    b2 = jax.random.normal(k_b2, (1, 1), dtype=jnp.float32) * 0.01
    params = (w1, b1, w2, b2)

    # Exact-semantics path (f32 throughout), tight check against the reference.
    out_f32, indices = main_decoder_forward(f_ref, f, params, k_perm,
                                            compute_dtype=jnp.float32)
    out_f32 = jax.block_until_ready(out_f32)
    ref_f32 = _reference_forward(f_ref, f, indices, params, jnp.float32)
    assert out_f32.shape == (B,)
    assert jnp.allclose(out_f32, ref_f32, atol=5e-4, rtol=5e-4), (out_f32, ref_f32)

    # Fast path: decoder matmul in bf16 with f32 accumulation (per perf review),
    # checked tightly against a dtype-matched reference and loosely against f32.
    out_bf16, indices2 = main_decoder_forward(f_ref, f, params, k_perm,
                                              compute_dtype=jnp.bfloat16)
    out_bf16 = jax.block_until_ready(out_bf16)
    ref_bf16 = _reference_forward(f_ref, f, indices2, params, jnp.bfloat16)
    assert jnp.allclose(out_bf16, ref_bf16, atol=5e-3, rtol=5e-3), (out_bf16, ref_bf16)
    assert jnp.allclose(out_bf16, ref_f32, atol=1e-1, rtol=1e-1), (out_bf16, ref_f32)

    print("KERNEL_OK")
</pallas_src>

<mosaic_0001>
module attributes {stable_mosaic.version = 11 : i64} {
  func.func @kernel(%arg0: i32, %arg1: memref<128x32xf32, #tpu.memory_space<vmem>>, %arg2: memref<128x32xf32, #tpu.memory_space<vmem>>, %arg3: memref<128x32xf32, #tpu.memory_space<vmem>>, %arg4: memref<32x128xf32, #tpu.memory_space<vmem>>, %arg5: memref<1x128xf32, #tpu.memory_space<vmem>>, %arg6: memref<1x128xf32, #tpu.memory_space<vmem>>, %arg7: memref<1x1x8xf32, #tpu.memory_space<vmem>>) attributes {dimension_semantics = [#tpu.dimension_semantics<parallel>], iteration_bounds = array<i64: 2>, scalar_prefetch = 0 : i64, scratch_operands = 0 : i64, tpu.core_type = #tpu.core_type<tc>, window_params = [{transform_indices = @transform_0, window_bounds = array<i64: 128, 32>}, {transform_indices = @transform_1, window_bounds = array<i64: 128, 32>}, {transform_indices = @transform_2, window_bounds = array<i64: 128, 32>}, {pipeline_mode = #tpu.pipeline_mode<synchronous>, transform_indices = @transform_3, window_bounds = array<i64: 32, 128>}, {pipeline_mode = #tpu.pipeline_mode<synchronous>, transform_indices = @transform_4, window_bounds = array<i64: 1, 128>}, {pipeline_mode = #tpu.pipeline_mode<synchronous>, transform_indices = @transform_5, window_bounds = array<i64: 1, 128>}, {transform_indices = @transform_6, window_bounds = array<i64: 1, 1, 8>}]} {
    %c0 = arith.constant 0 : index
    %c0_0 = arith.constant 0 : index
    %0 = vector.load %arg1[%c0, %c0_0] : memref<128x32xf32, #tpu.memory_space<vmem>>, vector<128x32xf32>
    %c0_1 = arith.constant 0 : index
    %c0_2 = arith.constant 0 : index
    %1 = vector.load %arg2[%c0_1, %c0_2] : memref<128x32xf32, #tpu.memory_space<vmem>>, vector<128x32xf32>
    %c0_3 = arith.constant 0 : index
    %c0_4 = arith.constant 0 : index
    %2 = vector.load %arg3[%c0_3, %c0_4] : memref<128x32xf32, #tpu.memory_space<vmem>>, vector<128x32xf32>
    %c0_5 = arith.constant 0 : index
    %c0_6 = arith.constant 0 : index
    %3 = vector.load %arg4[%c0_5, %c0_6] : memref<32x128xf32, #tpu.memory_space<vmem>>, vector<32x128xf32>
    %c0_7 = arith.constant 0 : index
    %c0_8 = arith.constant 0 : index
    %4 = vector.load %arg5[%c0_7, %c0_8] : memref<1x128xf32, #tpu.memory_space<vmem>>, vector<1x128xf32>
    %c0_9 = arith.constant 0 : index
    %c0_10 = arith.constant 0 : index
    %5 = vector.load %arg6[%c0_9, %c0_10] : memref<1x128xf32, #tpu.memory_space<vmem>>, vector<1x128xf32>
    %6 = arith.mulf %0, %1 : vector<128x32xf32>
    %7 = arith.addf %6, %0 : vector<128x32xf32>
    %8 = arith.addf %7, %1 : vector<128x32xf32>
    %9 = arith.mulf %0, %2 : vector<128x32xf32>
    %10 = arith.addf %9, %0 : vector<128x32xf32>
    %11 = arith.addf %10, %2 : vector<128x32xf32>
    %cst = arith.constant dense<0.000000e+00> : vector<128x128xf32>
    %12 = tpu.matmul %8, %3, %cst {dimension_numbers = #tpu.dot_dimension_numbers<[1], [0], [0], [1], [0, 0, 1, 1], [], []>} : vector<128x32xf32>, vector<32x128xf32>, vector<128x128xf32> -> vector<128x128xf32>
    %13 = vector.broadcast %4 : vector<1x128xf32> to vector<128x128xf32>
    %14 = arith.addf %12, %13 : vector<128x128xf32>
    %cst_11 = arith.constant dense<0.000000e+00> : vector<128x128xf32>
    %15 = tpu.matmul %11, %3, %cst_11 {dimension_numbers = #tpu.dot_dimension_numbers<[1], [0], [0], [1], [0, 0, 1, 1], [], []>} : vector<128x32xf32>, vector<32x128xf32>, vector<128x128xf32> -> vector<128x128xf32>
    %16 = vector.broadcast %4 : vector<1x128xf32> to vector<128x128xf32>
    %17 = arith.addf %15, %16 : vector<128x128xf32>
    %cst_12 = arith.constant 0.000000e+00 : f32
    %18 = vector.broadcast %cst_12 : f32 to vector<128x128xf32>
    %19 = arith.maximumf %14, %18 : vector<128x128xf32>
    %cst_13 = arith.constant 0.000000e+00 : f32
    %20 = vector.broadcast %cst_13 : f32 to vector<128x128xf32>
    %21 = arith.maximumf %17, %20 : vector<128x128xf32>
    %22 = vector.shape_cast %5 : vector<1x128xf32> to vector<1x1x128xf32>
    %23 = vector.shape_cast %19 : vector<128x128xf32> to vector<8x16x128xf32>
    %24 = vector.broadcast %22 : vector<1x1x128xf32> to vector<8x16x128xf32>
    %25 = arith.mulf %23, %24 : vector<8x16x128xf32>
    %cst_14 = arith.constant dense<0.000000e+00> : vector<8x16xf32>
    %26 = vector.multi_reduction <add>, %25, %cst_14 [2] : vector<8x16x128xf32> to vector<8x16xf32>
    %27 = vector.shape_cast %21 : vector<128x128xf32> to vector<8x16x128xf32>
    %28 = vector.broadcast %22 : vector<1x1x128xf32> to vector<8x16x128xf32>
    %29 = arith.mulf %27, %28 : vector<8x16x128xf32>
    %cst_15 = arith.constant dense<0.000000e+00> : vector<8x16xf32>
    %30 = vector.multi_reduction <add>, %29, %cst_15 [2] : vector<8x16x128xf32> to vector<8x16xf32>
    %cst_16 = arith.constant dense<0.000000e+00> : vector<8xf32>
    %31 = vector.multi_reduction <add>, %26, %cst_16 [1] : vector<8x16xf32> to vector<8xf32>
    %cst_17 = arith.constant 1.600000e+01 : f32
    %32 = vector.broadcast %cst_17 : f32 to vector<8xf32>
    %33 = arith.divf %31, %32 : vector<8xf32>
    %cst_18 = arith.constant dense<0xFF800000> : vector<8xf32>
    %34 = vector.multi_reduction <maximumf>, %30, %cst_18 [1] : vector<8x16xf32> to vector<8xf32>
    %35 = vector.shape_cast %34 : vector<8xf32> to vector<8x1xf32>
    %36 = vector.broadcast %35 : vector<8x1xf32> to vector<8x16xf32>
    %37 = arith.subf %30, %36 : vector<8x16xf32>
    %38 = math.exp %37 : vector<8x16xf32>
    %cst_19 = arith.constant dense<0.000000e+00> : vector<8xf32>
    %39 = vector.multi_reduction <add>, %38, %cst_19 [1] : vector<8x16xf32> to vector<8xf32>
    %40 = vector.shape_cast %35 : vector<8x1xf32> to vector<8xf32>
    %41 = math.log %39 : vector<8xf32>
    %42 = arith.addf %40, %41 : vector<8xf32>
    %cst_20 = arith.constant 0.000000e+00 : f32
    %43 = vector.broadcast %cst_20 : f32 to vector<8xf32>
    %44 = arith.subf %43, %33 : vector<8xf32>
    %45 = arith.addf %44, %42 : vector<8xf32>
    %cst_21 = arith.constant 2.77258873 : f32
    %46 = vector.broadcast %cst_21 : f32 to vector<8xf32>
    %47 = arith.subf %45, %46 : vector<8xf32>
    %48 = vector.shape_cast %47 : vector<8xf32> to vector<1x1x8xf32>
    %c0_22 = arith.constant 0 : index
    %c0_23 = arith.constant 0 : index
    %c0_24 = arith.constant 0 : index
    %49 = vector.load %arg7[%c0_22, %c0_23, %c0_24] : memref<1x1x8xf32, #tpu.memory_space<vmem>>, vector<1x1x8xf32>
    tpu.vector_store %arg7[%c0_22, %c0_23, %c0_24], %48 {strides = array<i32>} : memref<1x1x8xf32, #tpu.memory_space<vmem>>, vector<1x1x8xf32>,
    return
  }
  func.func @transform_0(%arg0: i32) -> (i32, i32) {
    %c0_i32 = arith.constant 0 : i32
    %c0_i32_0 = arith.constant 0 : i32
    return %arg0, %c0_i32 : i32, i32
  }
  func.func @transform_1(%arg0: i32) -> (i32, i32) {
    %c0_i32 = arith.constant 0 : i32
    %c0_i32_0 = arith.constant 0 : i32
    return %arg0, %c0_i32 : i32, i32
  }
  func.func @transform_2(%arg0: i32) -> (i32, i32) {
    %c0_i32 = arith.constant 0 : i32
    %c0_i32_0 = arith.constant 0 : i32
    return %arg0, %c0_i32 : i32, i32
  }
  func.func @transform_3(%arg0: i32) -> (i32, i32) {
    %c0_i32 = arith.constant 0 : i32
    %c0_i32_0 = arith.constant 0 : i32
    %c0_i32_1 = arith.constant 0 : i32
    return %c0_i32, %c0_i32_0 : i32, i32
  }
  func.func @transform_4(%arg0: i32) -> (i32, i32) {
    %c0_i32 = arith.constant 0 : i32
    %c0_i32_0 = arith.constant 0 : i32
    %c0_i32_1 = arith.constant 0 : i32
    return %c0_i32, %c0_i32_0 : i32, i32
  }
  func.func @transform_5(%arg0: i32) -> (i32, i32) {
    %c0_i32 = arith.constant 0 : i32
    %c0_i32_0 = arith.constant 0 : i32
    %c0_i32_1 = arith.constant 0 : i32
    return %c0_i32, %c0_i32_0 : i32, i32
  }
  func.func @transform_6(%arg0: i32) -> (i32, i32, i32) {
    %c0_i32 = arith.constant 0 : i32
    %c0_i32_0 = arith.constant 0 : i32
    %c0_i32_1 = arith.constant 0 : i32
    return %arg0, %c0_i32, %c0_i32_0 : i32, i32, i32
  }
}

</mosaic_0001>

<llo_original>
// kernel: tpu_custom_call.1
$region0: #{tpu_custom_call.1}
  #allocation0 [shape = 'u32[]', space=smem, size = 0x4, offset = 0x4, fixed_abs, tag = 'smem constant byte address 0x4 - core index']
  #allocation1 [shape = 'u32[144,128]{1,0:T(1,128)}', space=vmem, size = 0x12000, scoped, tag = 'internal scratch']
  %s0 = inlined_call_operand.vmem [shape: f32[256,32], index: 0, kind: input, shape index: {}]
  %s1 = inlined_call_operand.vmem [shape: f32[256,32], index: 1, kind: input, shape index: {}]
  %s2 = inlined_call_operand.vmem [shape: f32[256,32], index: 2, kind: input, shape index: {}]
  %s3 = inlined_call_operand.vmem [shape: f32[32,128], index: 3, kind: input, shape index: {}]
  %s4 = inlined_call_operand.vmem [shape: f32[1,128], index: 4, kind: input, shape index: {}]
  %s5 = inlined_call_operand.vmem [shape: f32[1,128], index: 5, kind: input, shape index: {}]
  %s6 = inlined_call_operand.hbm [shape: f32[2,1,8], index: 6, kind: output, shape index: {}]
  %s7 = sld [smem:[#allocation0]]
  $region57: #{tpu_custom_call.1} parent=0
    _
  %s9 = ssub.s32 1, %s7
  %s10 = scalar_select 0, %s9, %s7
  $region1: #{tpu_custom_call.1} parent=0
    #allocation2 [shape = 'u8[1024]{0}', space=vmem, size = 0x400, scoped, tag = 'output window, operand 0']
    #allocation3 [shape = 's32[2]{0}', space=sflag, size = 0x8, scoped, tag = 'scoped memory for tpu_custom_call.1']
    %11 = vsyncpa [#allocation3], 0
    %s12 = scalar_lea.sflag [#allocation3], 1
    %13 = vsyncpa %s12, 0
    loop: start=0, step=1, limit=4
    $region2: #{tpu_custom_call.1} parent=1 // loop_pre_header
      _
    $region3: #{tpu_custom_call.1} parent=1 // loop_header
      %s15 = sphi 0, %s19
      %p16 = scmp.ge.s32.totalorder %s15, 4
      %s25 = sphi 0, %s27
      %s28 = sphi 0, %s25
      %s29 = sphi 0, %s28
      %s45 = sphi 0, %s29
      %s51 = sphi 0, %s53
      %s54 = sphi 0, %s51
      %s55 = sphi 0, %s54
      %s71 = sphi 0, %s55
      %s77 = sphi 0, %s79
      %s80 = sphi 0, %s77
      %s81 = sphi 0, %s80
      %s97 = sphi 0, %s81
      %s101 = sphi 0, %s101
      %s103 = sphi 0, %s101
      %s104 = sphi 0, %s103
      %s118 = sphi 0, %s104
      %s122 = sphi 0, %s122
      %s124 = sphi 0, %s122
      %s125 = sphi 0, %s124
      %s139 = sphi 0, %s125
      %s143 = sphi 0, %s143
      %s145 = sphi 0, %s143
      %s146 = sphi 0, %s145
      %s160 = sphi 0, %s146
      %s166 = sphi 0, %s168
      %s169 = sphi 0, %s166
      %s170 = sphi 0, %s169
      %s186 = sphi 0, %s170
    $region4: #{tpu_custom_call.1} parent=1 // loop_header_branch
      %18 = sbr.rel (%p16) target = $region8
    $region5: #{tpu_custom_call.1} parent=1 // loop_body
      %s20 = ssub.s32 %s15, 1
      %s21 = ssub.s32 %s15, 2
      %s22 = sadd.s32 %s15, 1
      %s23 = ssub.s32 %s15, %s22
      %p24 = scmp.eq.s32.totalorder %s23, 0
      %s26 = sadd.s32 %s25, 1
      %s27 = scalar_select %p24, %s25, %s26
      %p30 = pneg %p24
      %p31 = scmp.eq.s32.totalorder %s15, 1
      %p32 = por %p30, %p31
      %p33 = scmp.ne.s32.totalorder %s25, %s28
      %p34 = scmp.eq.s32.totalorder %s15, 0
      %p35 = por %p33, %p34
      %p36 = scmp.ne.s32.totalorder %s25, %s28
      %p37 = scmp.eq.s32.totalorder %s20, 1
      %p38 = por %p36, %p37
      %p39 = scmp.ne.s32.totalorder %s28, %s29
      %p40 = scmp.eq.s32.totalorder %s20, 0
      %p41 = por %p39, %p40
      %p42 = scmp.ne.s32.totalorder %s28, %s29
      %p43 = scmp.eq.s32.totalorder %s21, 1
      %p44 = por %p42, %p43
      %p46 = scmp.ne.s32.totalorder %s29, %s45
      %p47 = scmp.eq.s32.totalorder %s21, 0
      %p48 = por %p46, %p47
      %s49 = ssub.s32 %s15, %s22
      %p50 = scmp.eq.s32.totalorder %s49, 0
      %s52 = sadd.s32 %s51, 1
      %s53 = scalar_select %p50, %s51, %s52
      %p56 = pneg %p50
      %p57 = scmp.eq.s32.totalorder %s15, 1
      %p58 = por %p56, %p57
      %p59 = scmp.ne.s32.totalorder %s51, %s54
      %p60 = scmp.eq.s32.totalorder %s15, 0
      %p61 = por %p59, %p60
      %p62 = scmp.ne.s32.totalorder %s51, %s54
      %p63 = scmp.eq.s32.totalorder %s20, 1
      %p64 = por %p62, %p63
      %p65 = scmp.ne.s32.totalorder %s54, %s55
      %p66 = scmp.eq.s32.totalorder %s20, 0
      %p67 = por %p65, %p66
      %p68 = scmp.ne.s32.totalorder %s54, %s55
      %p69 = scmp.eq.s32.totalorder %s21, 1
      %p70 = por %p68, %p69
      %p72 = scmp.ne.s32.totalorder %s55, %s71
      %p73 = scmp.eq.s32.totalorder %s21, 0
      %p74 = por %p72, %p73
      %s75 = ssub.s32 %s15, %s22
      %p76 = scmp.eq.s32.totalorder %s75, 0
      %s78 = sadd.s32 %s77, 1
      %s79 = scalar_select %p76, %s77, %s78
      %p82 = pneg %p76
      %p83 = scmp.eq.s32.totalorder %s15, 1
      %p84 = por %p82, %p83
      %p85 = scmp.ne.s32.totalorder %s77, %s80
      %p86 = scmp.eq.s32.totalorder %s15, 0
      %p87 = por %p85, %p86
      %p88 = scmp.ne.s32.totalorder %s77, %s80
      %p89 = scmp.eq.s32.totalorder %s20, 1
      %p90 = por %p88, %p89
      %p91 = scmp.ne.s32.totalorder %s80, %s81
      %p92 = scmp.eq.s32.totalorder %s20, 0
      %p93 = por %p91, %p92
      %p94 = scmp.ne.s32.totalorder %s80, %s81
      %p95 = scmp.eq.s32.totalorder %s21, 1
      %p96 = por %p94, %p95
      %p98 = scmp.ne.s32.totalorder %s81, %s97
      %p99 = scmp.eq.s32.totalorder %s21, 0
      %p100 = por %p98, %p99
      %s102 = sadd.s32 %s101, 1
      %p105 = scmp.eq.s32.totalorder %s15, 1
      %p106 = scmp.ne.s32.totalorder %s101, %s103
      %p107 = scmp.eq.s32.totalorder %s15, 0
      %p108 = por %p106, %p107
      %p109 = scmp.ne.s32.totalorder %s101, %s103
      %p110 = scmp.eq.s32.totalorder %s20, 1
      %p111 = por %p109, %p110
      %p112 = scmp.ne.s32.totalorder %s103, %s104
      %p113 = scmp.eq.s32.totalorder %s20, 0
      %p114 = por %p112, %p113
      %p115 = scmp.ne.s32.totalorder %s103, %s104
      %p116 = scmp.eq.s32.totalorder %s21, 1
      %p117 = por %p115, %p116
      %p119 = scmp.ne.s32.totalorder %s104, %s118
      %p120 = scmp.eq.s32.totalorder %s21, 0
      %p121 = por %p119, %p120
      %s123 = sadd.s32 %s122, 1
      %p126 = scmp.eq.s32.totalorder %s15, 1
      %p127 = scmp.ne.s32.totalorder %s122, %s124
      %p128 = scmp.eq.s32.totalorder %s15, 0
      %p129 = por %p127, %p128
      %p130 = scmp.ne.s32.totalorder %s122, %s124
      %p131 = scmp.eq.s32.totalorder %s20, 1
      %p132 = por %p130, %p131
      %p133 = scmp.ne.s32.totalorder %s124, %s125
      %p134 = scmp.eq.s32.totalorder %s20, 0
      %p135 = por %p133, %p134
      %p136 = scmp.ne.s32.totalorder %s124, %s125
      %p137 = scmp.eq.s32.totalorder %s21, 1
      %p138 = por %p136, %p137
      %p140 = scmp.ne.s32.totalorder %s125, %s139
      %p141 = scmp.eq.s32.totalorder %s21, 0
      %p142 = por %p140, %p141
      %s144 = sadd.s32 %s143, 1
      %p147 = scmp.eq.s32.totalorder %s15, 1
      %p148 = scmp.ne.s32.totalorder %s143, %s145
      %p149 = scmp.eq.s32.totalorder %s15, 0
      %p150 = por %p148, %p149
      %p151 = scmp.ne.s32.totalorder %s143, %s145
      %p152 = scmp.eq.s32.totalorder %s20, 1
      %p153 = por %p151, %p152
      %p154 = scmp.ne.s32.totalorder %s145, %s146
      %p155 = scmp.eq.s32.totalorder %s20, 0
      %p156 = por %p154, %p155
      %p157 = scmp.ne.s32.totalorder %s145, %s146
      %p158 = scmp.eq.s32.totalorder %s21, 1
      %p159 = por %p157, %p158
      %p161 = scmp.ne.s32.totalorder %s146, %s160
      %p162 = scmp.eq.s32.totalorder %s21, 0
      %p163 = por %p161, %p162
      %s164 = ssub.s32 %s15, %s22
      %p165 = scmp.eq.s32.totalorder %s164, 0
      %s167 = sadd.s32 %s166, 1
      %s168 = scalar_select %p165, %s166, %s167
      %p171 = pneg %p165
      %p172 = scmp.eq.s32.totalorder %s15, 1
      %p173 = por %p171, %p172
      %p174 = scmp.ne.s32.totalorder %s166, %s169
      %p175 = scmp.eq.s32.totalorder %s15, 0
      %p176 = por %p174, %p175
      %p177 = scmp.ne.s32.totalorder %s166, %s169
      %p178 = scmp.eq.s32.totalorder %s20, 1
      %p179 = por %p177, %p178
      %p180 = scmp.ne.s32.totalorder %s169, %s170
      %p181 = scmp.eq.s32.totalorder %s20, 0
      %p182 = por %p180, %p181
      %p183 = scmp.ne.s32.totalorder %s169, %s170
      %p184 = scmp.eq.s32.totalorder %s21, 1
      %p185 = por %p183, %p184
      %p187 = scmp.ne.s32.totalorder %s170, %s186
      %p188 = scmp.eq.s32.totalorder %s21, 0
      %p189 = por %p187, %p188
      %p190 = scmp.le.s32.totalorder 1, %s15
      %p191 = scmp.lt.s32.totalorder %s15, 3
      %p192 = pnand %p190, %p191
      %p193 = pneg %p192
      // Predicated region
      $region9: #{tpu_custom_call.1} parent=5 // pred_check
        _
      $region10: #{tpu_custom_call.1} parent=5 // pred_check_branch
        %195 = sbr.rel (%p192) target = $region12
      $region11: #{tpu_custom_call.1} parent=5 // pred_region
        %s196 = ssub.s32 %s15, 1
        // Predicated region
        $region13: #{tpu_custom_call.1} parent=11 // pred_check
          %p197 = pneg %p114
        $region14: #{tpu_custom_call.1} parent=11 // pred_check_branch
          %199 = sbr.rel (%p197) target = $region16
        $region15: #{tpu_custom_call.1} parent=11 // pred_region
          _
        $region16: #{tpu_custom_call.1} parent=11 // pred_fallthru
          _
        // Predicated region
        $region17: #{tpu_custom_call.1} parent=11 // pred_check
          %p200 = pneg %p135
        $region18: #{tpu_custom_call.1} parent=11 // pred_check_branch
          %202 = sbr.rel (%p200) target = $region20
        $region19: #{tpu_custom_call.1} parent=11 // pred_region
          _
        $region20: #{tpu_custom_call.1} parent=11 // pred_fallthru
          _
        // Predicated region
        $region21: #{tpu_custom_call.1} parent=11 // pred_check
          %p203 = pneg %p156
        $region22: #{tpu_custom_call.1} parent=11 // pred_check_branch
          %205 = sbr.rel (%p203) target = $region24
        $region23: #{tpu_custom_call.1} parent=11 // pred_region
          _
        $region24: #{tpu_custom_call.1} parent=11 // pred_fallthru
          _
      $region12: #{tpu_custom_call.1} parent=5 // pred_fallthru
        _
      %p206 = scmp.lt.s32.totalorder %s15, 2
      // Predicated region
      $region25: #{tpu_custom_call.1} parent=5 // pred_check
        %p207 = pneg %p206
      $region26: #{tpu_custom_call.1} parent=5 // pred_check_branch
        %209 = sbr.rel (%p207) target = $region28
      $region27: #{tpu_custom_call.1} parent=5 // pred_region
        // Predicated region
        $region29: #{tpu_custom_call.1} parent=27 // pred_check
          %p210 = pneg %p35
        $region30: #{tpu_custom_call.1} parent=27 // pred_check_branch
          %212 = sbr.rel (%p210) target = $region32
        $region31: #{tpu_custom_call.1} parent=27 // pred_region
          %s213 = smul.u32 16, %s15
          %p214 = scmp.lt.s32.totalorder %s213, 31
          %s215 = scalar_select %p214, %s213, 31
          %s216 = smul.addr %s215, 8
          %s217 = scalar_lea.vmem %s0, %s216
          %s218 = smul.u32 16, %s15
        $region32: #{tpu_custom_call.1} parent=27 // pred_fallthru
          _
        // Predicated region
        $region33: #{tpu_custom_call.1} parent=27 // pred_check
          %p219 = pneg %p61
        $region34: #{tpu_custom_call.1} parent=27 // pred_check_branch
          %221 = sbr.rel (%p219) target = $region36
        $region35: #{tpu_custom_call.1} parent=27 // pred_region
          %s222 = smul.u32 16, %s15
          %p223 = scmp.lt.s32.totalorder %s222, 31
          %s224 = scalar_select %p223, %s222, 31
          %s225 = smul.addr %s224, 8
          %s226 = scalar_lea.vmem %s1, %s225
          %s227 = smul.u32 16, %s15
        $region36: #{tpu_custom_call.1} parent=27 // pred_fallthru
          _
        // Predicated region
        $region37: #{tpu_custom_call.1} parent=27 // pred_check
          %p228 = pneg %p87
        $region38: #{tpu_custom_call.1} parent=27 // pred_check_branch
          %230 = sbr.rel (%p228) target = $region40
        $region39: #{tpu_custom_call.1} parent=27 // pred_region
          %s231 = smul.u32 16, %s15
          %p232 = scmp.lt.s32.totalorder %s231, 31
          %s233 = scalar_select %p232, %s231, 31
          %s234 = smul.addr %s233, 8
          %s235 = scalar_lea.vmem %s2, %s234
          %s236 = smul.u32 16, %s15
        $region40: #{tpu_custom_call.1} parent=27 // pred_fallthru
          _
      $region28: #{tpu_custom_call.1} parent=5 // pred_fallthru
        _
      %p237 = scmp.le.s32.totalorder 1, %s15
      %p238 = scmp.lt.s32.totalorder %s15, 3
      %p239 = pnand %p237, %p238
      %p240 = pneg %p239
      // Predicated region
      $region41: #{tpu_custom_call.1} parent=5 // pred_check
        _
      $region42: #{tpu_custom_call.1} parent=5 // pred_check_branch
        %242 = sbr.rel (%p239) target = $region44
      $region43: #{tpu_custom_call.1} parent=5 // pred_region
        %s243 = ssub.s32 %s15, 1
        %s244 = smul.u32 16, %s20
        %p245 = scmp.lt.s32.totalorder %s244, 31
        %s246 = scalar_select %p245, %s244, 31
        %s247 = smul.addr %s246, 8
        %s248 = scalar_lea.vmem %s0, %s247
        %p249 = pneg %p41
        %p250 = pneg %p38
        %s251 = smul.u32 16, %s20
        %p252 = scmp.lt.s32.totalorder %s251, 31
        %s253 = scalar_select %p252, %s251, 31
        %s254 = smul.addr %s253, 8
        %s255 = scalar_lea.vmem %s1, %s254
        %p256 = pneg %p67
        %p257 = pneg %p64
        %s258 = smul.u32 16, %s20
        %p259 = scmp.lt.s32.totalorder %s258, 31
        %s260 = scalar_select %p259, %s258, 31
        %s261 = smul.addr %s260, 8
        %s262 = scalar_lea.vmem %s2, %s261
        %p263 = pneg %p93
        %p264 = pneg %p90
        %p265 = pneg %p114
        %p266 = pneg %p111
        %p267 = pneg %p135
        %p268 = pneg %p132
        %p269 = pneg %p156
        %p270 = pneg %p153
        %p271 = pneg %p182
        %p272 = pneg %p179
        %s273 = sand.u32 %s169, 1
        %s274 = scalar_lea.sflag [#allocation3], %s273
        %s275 = sand.u32 %s169, 1
        %s276 = scalar_lea.vmem [#allocation2], %s275
        %s277 = smul.u32 16, %s20
        %p278 = scmp.lt.s32.totalorder %s277, 31
        %s279 = scalar_select %p278, %s277, 31
        %s280 = smul.addr %s279, 8
        %s281 = scalar_lea.vmem %s0, %s280
        %s282 = smul.u32 16, %s20
        %s283 = smul.u32 16, %s20
        %p284 = scmp.lt.s32.totalorder %s283, 31
        %s285 = scalar_select %p284, %s283, 31
        %s286 = smul.addr %s285, 8
        %s287 = scalar_lea.vmem %s1, %s286
        %s288 = smul.u32 16, %s20
        %s289 = smul.u32 16, %s20
        %p290 = scmp.lt.s32.totalorder %s289, 31
        %s291 = scalar_select %p290, %s289, 31
        %s292 = smul.addr %s291, 8
        %s293 = scalar_lea.vmem %s2, %s292
        %s294 = smul.u32 16, %s20
        %v295 = vld [vmem:[%s281] sm:$0xff]
        %v296 = vld [vmem:[%s281 + $0x8] sm:$0xff]
        %v297 = vld [vmem:[%s281 + $0x10] sm:$0xff]
        %v298 = vld [vmem:[%s281 + $0x18] sm:$0xff]
        %v299 = vld [vmem:[%s281 + $0x20] sm:$0xff]
        %v300 = vld [vmem:[%s281 + $0x28] sm:$0xff]
        %v301 = vld [vmem:[%s281 + $0x30] sm:$0xff]
        %v302 = vld [vmem:[%s281 + $0x38] sm:$0xff]
        %v303 = vld [vmem:[%s281 + $0x40] sm:$0xff]
        %v304 = vld [vmem:[%s281 + $0x48] sm:$0xff]
        %v305 = vld [vmem:[%s281 + $0x50] sm:$0xff]
        %v306 = vld [vmem:[%s281 + $0x58] sm:$0xff]
        %v307 = vld [vmem:[%s281 + $0x60] sm:$0xff]
        %v308 = vld [vmem:[%s281 + $0x68] sm:$0xff]
        %v309 = vld [vmem:[%s281 + $0x70] sm:$0xff]
        %v310 = vld [vmem:[%s281 + $0x78] sm:$0xff]
        %v311 = vld [vmem:[%s287] sm:$0xff]
        %v312 = vld [vmem:[%s287 + $0x8] sm:$0xff]
        %v313 = vld [vmem:[%s287 + $0x10] sm:$0xff]
        %v314 = vld [vmem:[%s287 + $0x18] sm:$0xff]
        %v315 = vld [vmem:[%s287 + $0x20] sm:$0xff]
        %v316 = vld [vmem:[%s287 + $0x28] sm:$0xff]
        %v317 = vld [vmem:[%s287 + $0x30] sm:$0xff]
        %v318 = vld [vmem:[%s287 + $0x38] sm:$0xff]
        %v319 = vld [vmem:[%s287 + $0x40] sm:$0xff]
        %v320 = vld [vmem:[%s287 + $0x48] sm:$0xff]
        %v321 = vld [vmem:[%s287 + $0x50] sm:$0xff]
        %v322 = vld [vmem:[%s287 + $0x58] sm:$0xff]
        %v323 = vld [vmem:[%s287 + $0x60] sm:$0xff]
        %v324 = vld [vmem:[%s287 + $0x68] sm:$0xff]
        %v325 = vld [vmem:[%s287 + $0x70] sm:$0xff]
        %v326 = vld [vmem:[%s287 + $0x78] sm:$0xff]
        %v327 = vld [vmem:[%s293] sm:$0xff]
        %v328 = vld [vmem:[%s293 + $0x8] sm:$0xff]
        %v329 = vld [vmem:[%s293 + $0x10] sm:$0xff]
        %v330 = vld [vmem:[%s293 + $0x18] sm:$0xff]
        %v331 = vld [vmem:[%s293 + $0x20] sm:$0xff]
        %v332 = vld [vmem:[%s293 + $0x28] sm:$0xff]
        %v333 = vld [vmem:[%s293 + $0x30] sm:$0xff]
        %v334 = vld [vmem:[%s293 + $0x38] sm:$0xff]
        %v335 = vld [vmem:[%s293 + $0x40] sm:$0xff]
        %v336 = vld [vmem:[%s293 + $0x48] sm:$0xff]
        %v337 = vld [vmem:[%s293 + $0x50] sm:$0xff]
        %v338 = vld [vmem:[%s293 + $0x58] sm:$0xff]
        %v339 = vld [vmem:[%s293 + $0x60] sm:$0xff]
        %v340 = vld [vmem:[%s293 + $0x68] sm:$0xff]
        %v341 = vld [vmem:[%s293 + $0x70] sm:$0xff]
        %v342 = vld [vmem:[%s293 + $0x78] sm:$0xff]
        %v343 = vld [vmem:[%s3] sm:$0xff]
        %v344 = vld [vmem:[%s3 + $0x8] sm:$0xff]
        %v345 = vld [vmem:[%s3 + $0x10] sm:$0xff]
        %v346 = vld [vmem:[%s3 + $0x18] sm:$0xff]
        %v347 = vld [vmem:[%s4] sm:$0x1]
        %v348 = vld [vmem:[%s5] sm:$0x1]
        %v349 = vmul.f32 %v295, %v311
        %v350 = vmul.f32 %v296, %v312
        %v351 = vmul.f32 %v297, %v313
        %v352 = vmul.f32 %v298, %v314
        %v353 = vmul.f32 %v299, %v315
        %v354 = vmul.f32 %v300, %v316
        %v355 = vmul.f32 %v301, %v317
        %v356 = vmul.f32 %v302, %v318
        %v357 = vmul.f32 %v303, %v319
        %v358 = vmul.f32 %v304, %v320
        %v359 = vmul.f32 %v305, %v321
        %v360 = vmul.f32 %v306, %v322
        %v361 = vmul.f32 %v307, %v323
        %v362 = vmul.f32 %v308, %v324
        %v363 = vmul.f32 %v309, %v325
        %v364 = vmul.f32 %v310, %v326
        %v365 = vadd.f32 %v349, %v295
        %v366 = vadd.f32 %v350, %v296
        %v367 = vadd.f32 %v351, %v297
        %v368 = vadd.f32 %v352, %v298
        %v369 = vadd.f32 %v353, %v299
        %v370 = vadd.f32 %v354, %v300
        %v371 = vadd.f32 %v355, %v301
        %v372 = vadd.f32 %v356, %v302
        %v373 = vadd.f32 %v357, %v303
        %v374 = vadd.f32 %v358, %v304
        %v375 = vadd.f32 %v359, %v305
        %v376 = vadd.f32 %v360, %v306
        %v377 = vadd.f32 %v361, %v307
        %v378 = vadd.f32 %v362, %v308
        %v379 = vadd.f32 %v363, %v309
        %v380 = vadd.f32 %v364, %v310
        %v381 = vadd.f32 %v365, %v311
        %v382 = vadd.f32 %v366, %v312
        %v383 = vadd.f32 %v367, %v313
        %v384 = vadd.f32 %v368, %v314
        %v385 = vadd.f32 %v369, %v315
        %v386 = vadd.f32 %v370, %v316
        %v387 = vadd.f32 %v371, %v317
        %v388 = vadd.f32 %v372, %v318
        %v389 = vadd.f32 %v373, %v319
        %v390 = vadd.f32 %v374, %v320
        %v391 = vadd.f32 %v375, %v321
        %v392 = vadd.f32 %v376, %v322
        %v393 = vadd.f32 %v377, %v323
        %v394 = vadd.f32 %v378, %v324
        %v395 = vadd.f32 %v379, %v325
        %v396 = vadd.f32 %v380, %v326
        %v397 = vmul.f32 %v295, %v327
        %v398 = vmul.f32 %v296, %v328
        %v399 = vmul.f32 %v297, %v329
        %v400 = vmul.f32 %v298, %v330
        %v401 = vmul.f32 %v299, %v331
        %v402 = vmul.f32 %v300, %v332
        %v403 = vmul.f32 %v301, %v333
        %v404 = vmul.f32 %v302, %v334
        %v405 = vmul.f32 %v303, %v335
        %v406 = vmul.f32 %v304, %v336
        %v407 = vmul.f32 %v305, %v337
        %v408 = vmul.f32 %v306, %v338
        %v409 = vmul.f32 %v307, %v339
        %v410 = vmul.f32 %v308, %v340
        %v411 = vmul.f32 %v309, %v341
        %v412 = vmul.f32 %v310, %v342
        %v413 = vadd.f32 %v397, %v295
        %v414 = vadd.f32 %v398, %v296
        %v415 = vadd.f32 %v399, %v297
        %v416 = vadd.f32 %v400, %v298
        %v417 = vadd.f32 %v401, %v299
        %v418 = vadd.f32 %v402, %v300
        %v419 = vadd.f32 %v403, %v301
        %v420 = vadd.f32 %v404, %v302
        %v421 = vadd.f32 %v405, %v303
        %v422 = vadd.f32 %v406, %v304
        %v423 = vadd.f32 %v407, %v305
        %v424 = vadd.f32 %v408, %v306
        %v425 = vadd.f32 %v409, %v307
        %v426 = vadd.f32 %v410, %v308
        %v427 = vadd.f32 %v411, %v309
        %v428 = vadd.f32 %v412, %v310
        %v429 = vadd.f32 %v413, %v327
        %v430 = vadd.f32 %v414, %v328
        %v431 = vadd.f32 %v415, %v329
        %v432 = vadd.f32 %v416, %v330
        %v433 = vadd.f32 %v417, %v331
        %v434 = vadd.f32 %v418, %v332
        %v435 = vadd.f32 %v419, %v333
        %v436 = vadd.f32 %v420, %v334
        %v437 = vadd.f32 %v421, %v335
        %v438 = vadd.f32 %v422, %v336
        %v439 = vadd.f32 %v423, %v337
        %v440 = vadd.f32 %v424, %v338
        %v441 = vadd.f32 %v425, %v339
        %v442 = vadd.f32 %v426, %v340
        %v443 = vadd.f32 %v427, %v341
        %v444 = vadd.f32 %v428, %v342
        %v446 = vlaneseq
        %v447 = vshrl.u32 %v446, 7
        %v448 = vsub.s32 0, %v447
        %v449 = vrot.slane %v347, %v448
        %vm451 = vcmask 261120
        %v453 = vsel %vm451, %v381, 0
        %v456 = vsel %vm451, %v382, 0
        %v459 = vsel %vm451, %v383, 0
        %v462 = vsel %vm451, %v384, 0
        %v465 = vsel %vm451, %v385, 0
        %v468 = vsel %vm451, %v386, 0
        %v471 = vsel %vm451, %v387, 0
        %v474 = vsel %vm451, %v388, 0
        %v477 = vsel %vm451, %v389, 0
        %v480 = vsel %vm451, %v390, 0
        %v483 = vsel %vm451, %v391, 0
        %v486 = vsel %vm451, %v392, 0
        %v489 = vsel %vm451, %v393, 0
        %v492 = vsel %vm451, %v394, 0
        %v495 = vsel %vm451, %v395, 0
        %v498 = vsel %vm451, %v396, 0
        %500 = vmatprep.subr.mxu0 0.0
        %501 = vmatpush1.msra.mxu0 %v343
        %502 = vmatprep.subr.mxu0 0.0
        %503 = vmatpush1.msra.mxu0 %v344
        %504 = vmatprep.subr.mxu0 0.0
        %505 = vmatpush1.msra.mxu0 %v345
        %506 = vmatprep.subr.mxu0 0.0
        %507 = vmatpush1.msra.mxu0 %v346
        %508 = vmatprep.subr.mxu0 0.0
        %509 = vmatpush1.msra.mxu0 0.0
        %510 = vmatprep.subr.mxu0 0.0
        %511 = vmatpush1.msra.mxu0 0.0
        %512 = vmatprep.subr.mxu0 0.0
        %513 = vmatpush1.msra.mxu0 0.0
        %514 = vmatprep.subr.mxu0 0.0
        %515 = vmatpush1.msra.mxu0 0.0
        %516 = vmatprep.subr.mxu0 0.0
        %517 = vmatpush1.msra.mxu0 0.0
        %518 = vmatprep.subr.mxu0 0.0
        %519 = vmatpush1.msra.mxu0 0.0
        %520 = vmatprep.subr.mxu0 0.0
        %521 = vmatpush1.msra.mxu0 0.0
        %522 = vmatprep.subr.mxu0 0.0
        %523 = vmatpush1.msra.mxu0 0.0
        %524 = vmatprep.subr.mxu0 0.0
        %525 = vmatpush1.msra.mxu0 0.0
        %526 = vmatprep.subr.mxu0 0.0
        %527 = vmatpush1.msra.mxu0 0.0
        %528 = vmatprep.subr.mxu0 0.0
        %529 = vmatpush1.msra.mxu0 0.0
        %530 = vmatprep.subr.mxu0 0.0
        %531 = vmatpush1.msra.mxu0 0.0
        %532 = vmatprep.subr.mxu0 0.0
        %533 = vmatpush1.msra.mxu0 0.0
        %534 = vmatprep.subr.mxu0 0.0
        %535 = vmatpush1.msra.mxu0 0.0
        %536 = vmatprep.subr.mxu0 0.0
        %537 = vmatpush1.msra.mxu0 0.0
        %538 = vmatprep.subr.mxu0 0.0
        %539 = vmatpush1.msra.mxu0 0.0
        %540 = vmatprep.subr.mxu0 0.0
        %541 = vmatpush1.msra.mxu0 0.0
        %542 = vmatprep.subr.mxu0 0.0
        %543 = vmatpush1.msra.mxu0 0.0
        %544 = vmatprep.subr.mxu0 0.0
        %545 = vmatpush1.msra.mxu0 0.0
        %546 = vmatprep.subr.mxu0 0.0
        %547 = vmatpush1.msra.mxu0 0.0
        %548 = vmatprep.subr.mxu0 0.0
        %549 = vmatpush1.msra.mxu0 0.0
        %550 = vmatprep.subr.mxu0 0.0
        %551 = vmatpush1.msra.mxu0 0.0
        %552 = vmatprep.subr.mxu0 0.0
        %553 = vmatpush1.msra.mxu0 0.0
        %554 = vmatprep.subr.mxu0 0.0
        %555 = vmatpush1.msra.mxu0 0.0
        %556 = vmatprep.subr.mxu0 0.0
        %557 = vmatpush1.msra.mxu0 0.0
        %558 = vmatprep.subr.mxu0 0.0
        %559 = vmatpush1.msra.mxu0 0.0
        %560 = vmatprep.subr.mxu0 0.0
        %561 = vmatpush1.msra.mxu0 0.0
        %562 = vmatprep.subr.mxu0 0.0
        %563 = vmatpush1.msra.mxu0 0.0
        %564 = vmatprep.mubr.f32.mxu0 0.0
        %565 = vmatmul.mubr.f32.gmra.mrb[0].mxu0 %v453
        %v566 = vpop.f32.mrb[0].mxu0
        %v567 = vadd.f32 %v449, %v566
        %v568 = vpop.f32.mrb[0].mxu0
        %569 = vmatprep.mubr.f32.mxu0 0.0
        %570 = vmatmul.mubr.f32.gmra.mrb[0].mxu0 %v456
        %v571 = vpop.f32.mrb[0].mxu0
        %v572 = vadd.f32 %v449, %v571
        %v573 = vpop.f32.mrb[0].mxu0
        %574 = vmatprep.mubr.f32.mxu0 0.0
        %575 = vmatmul.mubr.f32.gmra.mrb[0].mxu0 %v459
        %v576 = vpop.f32.mrb[0].mxu0
        %v577 = vadd.f32 %v449, %v576
        %v578 = vpop.f32.mrb[0].mxu0
        %579 = vmatprep.mubr.f32.mxu0 0.0
        %580 = vmatmul.mubr.f32.gmra.mrb[0].mxu0 %v462
        %v581 = vpop.f32.mrb[0].mxu0
        %v582 = vadd.f32 %v449, %v581
        %v583 = vpop.f32.mrb[0].mxu0
        %584 = vmatprep.mubr.f32.mxu0 0.0
        %585 = vmatmul.mubr.f32.gmra.mrb[0].mxu0 %v465
        %v586 = vpop.f32.mrb[0].mxu0
        %v587 = vadd.f32 %v449, %v586
        %v588 = vpop.f32.mrb[0].mxu0
        %589 = vmatprep.mubr.f32.mxu0 0.0
        %590 = vmatmul.mubr.f32.gmra.mrb[0].mxu0 %v468
        %v591 = vpop.f32.mrb[0].mxu0
        %v592 = vadd.f32 %v449, %v591
        %v593 = vpop.f32.mrb[0].mxu0
        %594 = vmatprep.mubr.f32.mxu0 0.0
        %595 = vmatmul.mubr.f32.gmra.mrb[0].mxu0 %v471
        %v596 = vpop.f32.mrb[0].mxu0
        %v597 = vadd.f32 %v449, %v596
        %v598 = vpop.f32.mrb[0].mxu0
        %599 = vmatprep.mubr.f32.mxu0 0.0
        %600 = vmatmul.mubr.f32.gmra.mrb[0].mxu0 %v474
        %v601 = vpop.f32.mrb[0].mxu0
        %v602 = vadd.f32 %v449, %v601
        %v603 = vpop.f32.mrb[0].mxu0
        %604 = vmatprep.mubr.f32.mxu0 0.0
        %605 = vmatmul.mubr.f32.gmra.mrb[0].mxu0 %v477
        %v606 = vpop.f32.mrb[0].mxu0
        %v607 = vadd.f32 %v449, %v606
        %v608 = vpop.f32.mrb[0].mxu0
        %609 = vmatprep.mubr.f32.mxu0 0.0
        %610 = vmatmul.mubr.f32.gmra.mrb[0].mxu0 %v480
        %v611 = vpop.f32.mrb[0].mxu0
        %v612 = vadd.f32 %v449, %v611
        %v613 = vpop.f32.mrb[0].mxu0
        %614 = vmatprep.mubr.f32.mxu0 0.0
        %615 = vmatmul.mubr.f32.gmra.mrb[0].mxu0 %v483
        %v616 = vpop.f32.mrb[0].mxu0
        %v617 = vadd.f32 %v449, %v616
        %v618 = vpop.f32.mrb[0].mxu0
        %619 = vmatprep.mubr.f32.mxu0 0.0
        %620 = vmatmul.mubr.f32.gmra.mrb[0].mxu0 %v486
        %v621 = vpop.f32.mrb[0].mxu0
        %v622 = vadd.f32 %v449, %v621
        %v623 = vpop.f32.mrb[0].mxu0
        %624 = vmatprep.mubr.f32.mxu0 0.0
        %625 = vmatmul.mubr.f32.gmra.mrb[0].mxu0 %v489
        %v626 = vpop.f32.mrb[0].mxu0
        %v627 = vadd.f32 %v449, %v626
        %v628 = vpop.f32.mrb[0].mxu0
        %629 = vmatprep.mubr.f32.mxu0 0.0
        %630 = vmatmul.mubr.f32.gmra.mrb[0].mxu0 %v492
        %v631 = vpop.f32.mrb[0].mxu0
        %v632 = vadd.f32 %v449, %v631
        %v633 = vpop.f32.mrb[0].mxu0
        %634 = vmatprep.mubr.f32.mxu0 0.0
        %635 = vmatmul.mubr.f32.gmra.mrb[0].mxu0 %v495
        %v636 = vpop.f32.mrb[0].mxu0
        %v637 = vadd.f32 %v449, %v636
        %v638 = vpop.f32.mrb[0].mxu0
        %639 = vmatprep.mubr.f32.mxu0 0.0
        %640 = vmatmul.mubr.f32.gmra.mrb[0].mxu0 %v498
        %v641 = vpop.f32.mrb[0].mxu0
        %v642 = vadd.f32 %v449, %v641
        %v643 = vpop.f32.mrb[0].mxu0
        %644 = vdwg.mxu0
        %v646 = vsel %vm451, %v429, 0
        %v649 = vsel %vm451, %v430, 0
        %v652 = vsel %vm451, %v431, 0
        %v655 = vsel %vm451, %v432, 0
        %v658 = vsel %vm451, %v433, 0
        %v661 = vsel %vm451, %v434, 0
        %v664 = vsel %vm451, %v435, 0
        %v667 = vsel %vm451, %v436, 0
        %v670 = vsel %vm451, %v437, 0
        %v673 = vsel %vm451, %v438, 0
        %v676 = vsel %vm451, %v439, 0
        %v679 = vsel %vm451, %v440, 0
        %v682 = vsel %vm451, %v441, 0
        %v685 = vsel %vm451, %v442, 0
        %v688 = vsel %vm451, %v443, 0
        %v691 = vsel %vm451, %v444, 0
        %693 = vmatprep.subr.mxu0 0.0
        %694 = vmatpush1.msra.mxu0 %v343
        %695 = vmatprep.subr.mxu0 0.0
        %696 = vmatpush1.msra.mxu0 %v344
        %697 = vmatprep.subr.mxu0 0.0
        %698 = vmatpush1.msra.mxu0 %v345
        %699 = vmatprep.subr.mxu0 0.0
        %700 = vmatpush1.msra.mxu0 %v346
        %701 = vmatprep.subr.mxu0 0.0
        %702 = vmatpush1.msra.mxu0 0.0
        %703 = vmatprep.subr.mxu0 0.0
        %704 = vmatpush1.msra.mxu0 0.0
        %705 = vmatprep.subr.mxu0 0.0
        %706 = vmatpush1.msra.mxu0 0.0
        %707 = vmatprep.subr.mxu0 0.0
        %708 = vmatpush1.msra.mxu0 0.0
        %709 = vmatprep.subr.mxu0 0.0
        %710 = vmatpush1.msra.mxu0 0.0
        %711 = vmatprep.subr.mxu0 0.0
        %712 = vmatpush1.msra.mxu0 0.0
        %713 = vmatprep.subr.mxu0 0.0
        %714 = vmatpush1.msra.mxu0 0.0
        %715 = vmatprep.subr.mxu0 0.0
        %716 = vmatpush1.msra.mxu0 0.0
        %717 = vmatprep.subr.mxu0 0.0
        %718 = vmatpush1.msra.mxu0 0.0
        %719 = vmatprep.subr.mxu0 0.0
        %720 = vmatpush1.msra.mxu0 0.0
        %721 = vmatprep.subr.mxu0 0.0
        %722 = vmatpush1.msra.mxu0 0.0
        %723 = vmatprep.subr.mxu0 0.0
        %724 = vmatpush1.msra.mxu0 0.0
        %725 = vmatprep.subr.mxu0 0.0
        %726 = vmatpush1.msra.mxu0 0.0
        %727 = vmatprep.subr.mxu0 0.0
        %728 = vmatpush1.msra.mxu0 0.0
        %729 = vmatprep.subr.mxu0 0.0
        %730 = vmatpush1.msra.mxu0 0.0
        %731 = vmatprep.subr.mxu0 0.0
        %732 = vmatpush1.msra.mxu0 0.0
        %733 = vmatprep.subr.mxu0 0.0
        %734 = vmatpush1.msra.mxu0 0.0
        %735 = vmatprep.subr.mxu0 0.0
        %736 = vmatpush1.msra.mxu0 0.0
        %737 = vmatprep.subr.mxu0 0.0
        %738 = vmatpush1.msra.mxu0 0.0
        %739 = vmatprep.subr.mxu0 0.0
        %740 = vmatpush1.msra.mxu0 0.0
        %741 = vmatprep.subr.mxu0 0.0
        %742 = vmatpush1.msra.mxu0 0.0
        %743 = vmatprep.subr.mxu0 0.0
        %744 = vmatpush1.msra.mxu0 0.0
        %745 = vmatprep.subr.mxu0 0.0
        %746 = vmatpush1.msra.mxu0 0.0
        %747 = vmatprep.subr.mxu0 0.0
        %748 = vmatpush1.msra.mxu0 0.0
        %749 = vmatprep.subr.mxu0 0.0
        %750 = vmatpush1.msra.mxu0 0.0
        %751 = vmatprep.subr.mxu0 0.0
        %752 = vmatpush1.msra.mxu0 0.0
        %753 = vmatprep.subr.mxu0 0.0
        %754 = vmatpush1.msra.mxu0 0.0
        %755 = vmatprep.subr.mxu0 0.0
        %756 = vmatpush1.msra.mxu0 0.0
        %757 = vmatprep.mubr.f32.mxu0 0.0
        %758 = vmatmul.mubr.f32.gmra.mrb[0].mxu0 %v646
        %v759 = vpop.f32.mrb[0].mxu0
        %v760 = vadd.f32 %v449, %v759
        %v761 = vpop.f32.mrb[0].mxu0
        %762 = vmatprep.mubr.f32.mxu0 0.0
        %763 = vmatmul.mubr.f32.gmra.mrb[0].mxu0 %v649
        %v764 = vpop.f32.mrb[0].mxu0
        %v765 = vadd.f32 %v449, %v764
        %v766 = vpop.f32.mrb[0].mxu0
        %767 = vmatprep.mubr.f32.mxu0 0.0
        %768 = vmatmul.mubr.f32.gmra.mrb[0].mxu0 %v652
        %v769 = vpop.f32.mrb[0].mxu0
        %v770 = vadd.f32 %v449, %v769
        %v771 = vpop.f32.mrb[0].mxu0
        %772 = vmatprep.mubr.f32.mxu0 0.0
        %773 = vmatmul.mubr.f32.gmra.mrb[0].mxu0 %v655
        %v774 = vpop.f32.mrb[0].mxu0
        %v775 = vadd.f32 %v449, %v774
        %v776 = vpop.f32.mrb[0].mxu0
        %777 = vmatprep.mubr.f32.mxu0 0.0
        %778 = vmatmul.mubr.f32.gmra.mrb[0].mxu0 %v658
        %v779 = vpop.f32.mrb[0].mxu0
        %v780 = vadd.f32 %v449, %v779
        %v781 = vpop.f32.mrb[0].mxu0
        %782 = vmatprep.mubr.f32.mxu0 0.0
        %783 = vmatmul.mubr.f32.gmra.mrb[0].mxu0 %v661
        %v784 = vpop.f32.mrb[0].mxu0
        %v785 = vadd.f32 %v449, %v784
        %v786 = vpop.f32.mrb[0].mxu0
        %787 = vmatprep.mubr.f32.mxu0 0.0
        %788 = vmatmul.mubr.f32.gmra.mrb[0].mxu0 %v664
        %v789 = vpop.f32.mrb[0].mxu0
        %v790 = vadd.f32 %v449, %v789
        %v791 = vpop.f32.mrb[0].mxu0
        %792 = vmatprep.mubr.f32.mxu0 0.0
        %793 = vmatmul.mubr.f32.gmra.mrb[0].mxu0 %v667
        %v794 = vpop.f32.mrb[0].mxu0
        %v795 = vadd.f32 %v449, %v794
        %v796 = vpop.f32.mrb[0].mxu0
        %797 = vmatprep.mubr.f32.mxu0 0.0
        %798 = vmatmul.mubr.f32.gmra.mrb[0].mxu0 %v670
        %v799 = vpop.f32.mrb[0].mxu0
        %v800 = vadd.f32 %v449, %v799
        %v801 = vpop.f32.mrb[0].mxu0
        %802 = vmatprep.mubr.f32.mxu0 0.0
        %803 = vmatmul.mubr.f32.gmra.mrb[0].mxu0 %v673
        %v804 = vpop.f32.mrb[0].mxu0
        %v805 = vadd.f32 %v449, %v804
        %v806 = vpop.f32.mrb[0].mxu0
        %807 = vmatprep.mubr.f32.mxu0 0.0
        %808 = vmatmul.mubr.f32.gmra.mrb[0].mxu0 %v676
        %v809 = vpop.f32.mrb[0].mxu0
        %v810 = vadd.f32 %v449, %v809
        %v811 = vpop.f32.mrb[0].mxu0
        %812 = vmatprep.mubr.f32.mxu0 0.0
        %813 = vmatmul.mubr.f32.gmra.mrb[0].mxu0 %v679
        %v814 = vpop.f32.mrb[0].mxu0
        %v815 = vadd.f32 %v449, %v814
        %v816 = vpop.f32.mrb[0].mxu0
        %817 = vmatprep.mubr.f32.mxu0 0.0
        %818 = vmatmul.mubr.f32.gmra.mrb[0].mxu0 %v682
        %v819 = vpop.f32.mrb[0].mxu0
        %v820 = vadd.f32 %v449, %v819
        %v821 = vpop.f32.mrb[0].mxu0
        %822 = vmatprep.mubr.f32.mxu0 0.0
        %823 = vmatmul.mubr.f32.gmra.mrb[0].mxu0 %v685
        %v824 = vpop.f32.mrb[0].mxu0
        %v825 = vadd.f32 %v449, %v824
        %v826 = vpop.f32.mrb[0].mxu0
        %827 = vmatprep.mubr.f32.mxu0 0.0
        %828 = vmatmul.mubr.f32.gmra.mrb[0].mxu0 %v688
        %v829 = vpop.f32.mrb[0].mxu0
        %v830 = vadd.f32 %v449, %v829
        %v831 = vpop.f32.mrb[0].mxu0
        %832 = vmatprep.mubr.f32.mxu0 0.0
        %833 = vmatmul.mubr.f32.gmra.mrb[0].mxu0 %v691
        %v834 = vpop.f32.mrb[0].mxu0
        %v835 = vadd.f32 %v449, %v834
        %v836 = vpop.f32.mrb[0].mxu0
        %837 = vdwg.mxu0
        %v838 = vmax.f32 %v567, 0.0
        %v839 = vmax.f32 %v572, 0.0
        %v840 = vmax.f32 %v577, 0.0
        %v841 = vmax.f32 %v582, 0.0
        %v842 = vmax.f32 %v587, 0.0
        %v843 = vmax.f32 %v592, 0.0
        %v844 = vmax.f32 %v597, 0.0
        %v845 = vmax.f32 %v602, 0.0
        %v846 = vmax.f32 %v607, 0.0
        %v847 = vmax.f32 %v612, 0.0
        %v848 = vmax.f32 %v617, 0.0
        %v849 = vmax.f32 %v622, 0.0
        %v850 = vmax.f32 %v627, 0.0
        %v851 = vmax.f32 %v632, 0.0
        %v852 = vmax.f32 %v637, 0.0
        %v853 = vmax.f32 %v642, 0.0
        %v854 = vmax.f32 %v760, 0.0
        %v855 = vmax.f32 %v765, 0.0
        %v856 = vmax.f32 %v770, 0.0
        %v857 = vmax.f32 %v775, 0.0
        %v858 = vmax.f32 %v780, 0.0
        %v859 = vmax.f32 %v785, 0.0
        %v860 = vmax.f32 %v790, 0.0
        %v861 = vmax.f32 %v795, 0.0
        %v862 = vmax.f32 %v800, 0.0
        %v863 = vmax.f32 %v805, 0.0
        %v864 = vmax.f32 %v810, 0.0
        %v865 = vmax.f32 %v815, 0.0
        %v866 = vmax.f32 %v820, 0.0
        %v867 = vmax.f32 %v825, 0.0
        %v868 = vmax.f32 %v830, 0.0
        %v869 = vmax.f32 %v835, 0.0
        %v871 = vlaneseq
        %v872 = vshrl.u32 %v871, 7
        %v873 = vsub.s32 0, %v872
        %v874 = vrot.slane %v348, %v873
        %v876 = vmul.f32 %v838, %v874
        %v877 = vmul.f32 %v839, %v874
        %v878 = vmul.f32 %v840, %v874
        %v879 = vmul.f32 %v841, %v874
        %v880 = vmul.f32 %v842, %v874
        %v881 = vmul.f32 %v843, %v874
        %v882 = vmul.f32 %v844, %v874
        %v883 = vmul.f32 %v845, %v874
        %v884 = vmul.f32 %v846, %v874
        %v885 = vmul.f32 %v847, %v874
        %v886 = vmul.f32 %v848, %v874
        %v887 = vmul.f32 %v849, %v874
        %v888 = vmul.f32 %v850, %v874
        %v889 = vmul.f32 %v851, %v874
        %v890 = vmul.f32 %v852, %v874
        %v891 = vmul.f32 %v853, %v874
        %892 = vadd.xlane.f32.xlu0 %v876
        %v893 = vpop.xlane.xlu0 %892
        %894 = vadd.xlane.f32.xlu0 %v877
        %v895 = vpop.xlane.xlu0 %894
        %896 = vadd.xlane.f32.xlu0 %v878
        %v897 = vpop.xlane.xlu0 %896
        %898 = vadd.xlane.f32.xlu0 %v879
        %v899 = vpop.xlane.xlu0 %898
        %900 = vadd.xlane.f32.xlu0 %v880
        %v901 = vpop.xlane.xlu0 %900
        %902 = vadd.xlane.f32.xlu0 %v881
        %v903 = vpop.xlane.xlu0 %902
        %904 = vadd.xlane.f32.xlu0 %v882
        %v905 = vpop.xlane.xlu0 %904
        %906 = vadd.xlane.f32.xlu0 %v883
        %v907 = vpop.xlane.xlu0 %906
        %908 = vadd.xlane.f32.xlu0 %v884
        %v909 = vpop.xlane.xlu0 %908
        %910 = vadd.xlane.f32.xlu0 %v885
        %v911 = vpop.xlane.xlu0 %910
        %912 = vadd.xlane.f32.xlu0 %v886
        %v913 = vpop.xlane.xlu0 %912
        %914 = vadd.xlane.f32.xlu0 %v887
        %v915 = vpop.xlane.xlu0 %914
        %916 = vadd.xlane.f32.xlu0 %v888
        %v917 = vpop.xlane.xlu0 %916
        %918 = vadd.xlane.f32.xlu0 %v889
        %v919 = vpop.xlane.xlu0 %918
        %920 = vadd.xlane.f32.xlu0 %v890
        %v921 = vpop.xlane.xlu0 %920
        %922 = vadd.xlane.f32.xlu0 %v891
        %v923 = vpop.xlane.xlu0 %922
        %v924 = vmul.f32 %v854, %v874
        %v925 = vmul.f32 %v855, %v874
        %v926 = vmul.f32 %v856, %v874
        %v927 = vmul.f32 %v857, %v874
        %v928 = vmul.f32 %v858, %v874
        %v929 = vmul.f32 %v859, %v874
        %v930 = vmul.f32 %v860, %v874
        %v931 = vmul.f32 %v861, %v874
        %v932 = vmul.f32 %v862, %v874
        %v933 = vmul.f32 %v863, %v874
        %v934 = vmul.f32 %v864, %v874
        %v935 = vmul.f32 %v865, %v874
        %v936 = vmul.f32 %v866, %v874
        %v937 = vmul.f32 %v867, %v874
        %v938 = vmul.f32 %v868, %v874
        %v939 = vmul.f32 %v869, %v874
        %940 = vadd.xlane.f32.xlu0 %v924
        %v941 = vpop.xlane.xlu0 %940
        %942 = vadd.xlane.f32.xlu0 %v925
        %v943 = vpop.xlane.xlu0 %942
        %944 = vadd.xlane.f32.xlu0 %v926
        %v945 = vpop.xlane.xlu0 %944
        %946 = vadd.xlane.f32.xlu0 %v927
        %v947 = vpop.xlane.xlu0 %946
        %948 = vadd.xlane.f32.xlu0 %v928
        %v949 = vpop.xlane.xlu0 %948
        %950 = vadd.xlane.f32.xlu0 %v929
        %v951 = vpop.xlane.xlu0 %950
        %952 = vadd.xlane.f32.xlu0 %v930
        %v953 = vpop.xlane.xlu0 %952
        %954 = vadd.xlane.f32.xlu0 %v931
        %v955 = vpop.xlane.xlu0 %954
        %956 = vadd.xlane.f32.xlu0 %v932
        %v957 = vpop.xlane.xlu0 %956
        %958 = vadd.xlane.f32.xlu0 %v933
        %v959 = vpop.xlane.xlu0 %958
        %960 = vadd.xlane.f32.xlu0 %v934
        %v961 = vpop.xlane.xlu0 %960
        %962 = vadd.xlane.f32.xlu0 %v935
        %v963 = vpop.xlane.xlu0 %962
        %964 = vadd.xlane.f32.xlu0 %v936
        %v965 = vpop.xlane.xlu0 %964
        %966 = vadd.xlane.f32.xlu0 %v937
        %v967 = vpop.xlane.xlu0 %966
        %968 = vadd.xlane.f32.xlu0 %v938
        %v969 = vpop.xlane.xlu0 %968
        %970 = vadd.xlane.f32.xlu0 %v939
        %v971 = vpop.xlane.xlu0 %970
        %v988 = vlaneseq
        %v989 = vand.u32 %v988, 127
        %v990 = vlaneseq
        %v991 = vshrl.u32 %v990, 7
        %v992 = vsub.s32 %v989, %v991
        %v993 = vrot.slane %v893, %v992
        %v994 = vadd.s32 %v989, 4294967288
        %v995 = vlaneseq
        %v996 = vshrl.u32 %v995, 7
        %v997 = vsub.s32 %v994, %v996
        %v998 = vrot.slane %v895, %v997
        %vm999 = vcmask 130112
        %v1000 = vsel %vm999, %v998, %v993
        %v1001 = vlaneseq
        %v1002 = vshrl.u32 %v1001, 7
        %v1003 = vsub.s32 %v989, %v1002
        %v1004 = vrot.slane %v897, %v1003
        %v1005 = vlaneseq
        %v1006 = vshrl.u32 %v1005, 7
        %v1007 = vsub.s32 %v994, %v1006
        %v1008 = vrot.slane %v899, %v1007
        %v1009 = vsel %vm999, %v1008, %v1004
        %v1010 = vlaneseq
        %v1011 = vshrl.u32 %v1010, 7
        %v1012 = vsub.s32 %v989, %v1011
        %v1013 = vrot.slane %v901, %v1012
        %v1014 = vlaneseq
        %v1015 = vshrl.u32 %v1014, 7
        %v1016 = vsub.s32 %v994, %v1015
        %v1017 = vrot.slane %v903, %v1016
        %v1018 = vsel %vm999, %v1017, %v1013
        %v1019 = vlaneseq
        %v1020 = vshrl.u32 %v1019, 7
        %v1021 = vsub.s32 %v989, %v1020
        %v1022 = vrot.slane %v905, %v1021
        %v1023 = vlaneseq
        %v1024 = vshrl.u32 %v1023, 7
        %v1025 = vsub.s32 %v994, %v1024
        %v1026 = vrot.slane %v907, %v1025
        %v1027 = vsel %vm999, %v1026, %v1022
        %v1028 = vlaneseq
        %v1029 = vshrl.u32 %v1028, 7
        %v1030 = vsub.s32 %v989, %v1029
        %v1031 = vrot.slane %v909, %v1030
        %v1032 = vlaneseq
        %v1033 = vshrl.u32 %v1032, 7
        %v1034 = vsub.s32 %v994, %v1033
        %v1035 = vrot.slane %v911, %v1034
        %v1036 = vsel %vm999, %v1035, %v1031
        %v1037 = vlaneseq
        %v1038 = vshrl.u32 %v1037, 7
        %v1039 = vsub.s32 %v989, %v1038
        %v1040 = vrot.slane %v913, %v1039
        %v1041 = vlaneseq
        %v1042 = vshrl.u32 %v1041, 7
        %v1043 = vsub.s32 %v994, %v1042
        %v1044 = vrot.slane %v915, %v1043
        %v1045 = vsel %vm999, %v1044, %v1040
        %v1046 = vlaneseq
        %v1047 = vshrl.u32 %v1046, 7
        %v1048 = vsub.s32 %v989, %v1047
        %v1049 = vrot.slane %v917, %v1048
        %v1050 = vlaneseq
        %v1051 = vshrl.u32 %v1050, 7
        %v1052 = vsub.s32 %v994, %v1051
        %v1053 = vrot.slane %v919, %v1052
        %v1054 = vsel %vm999, %v1053, %v1049
        %v1055 = vlaneseq
        %v1056 = vshrl.u32 %v1055, 7
        %v1057 = vsub.s32 %v989, %v1056
        %v1058 = vrot.slane %v921, %v1057
        %v1059 = vlaneseq
        %v1060 = vshrl.u32 %v1059, 7
        %v1061 = vsub.s32 %v994, %v1060
        %v1062 = vrot.slane %v923, %v1061
        %v1063 = vsel %vm999, %v1062, %v1058
        %vm1064 = vcmask 1041409
        %v1065 = vsel %vm1064, %v1009, %v1000
        %vm1066 = vcmask 1042434
        %v1067 = vsel %vm1066, %v1018, %v1065
        %vm1068 = vcmask 1043459
        %v1069 = vsel %vm1068, %v1027, %v1067
        %vm1070 = vcmask 1044484
        %v1071 = vsel %vm1070, %v1036, %v1069
        %vm1072 = vcmask 1045509
        %v1073 = vsel %vm1072, %v1045, %v1071
        %vm1074 = vcmask 1046534
        %v1075 = vsel %vm1074, %v1054, %v1073
        %vm1076 = vcmask 1047559
        %v1077 = vsel %vm1076, %v1063, %v1075
        %vm1079 = vcmask 130048
        %v1080 = vsel %vm1079, %v1077, 0.0
        %1081 = vadd.xlane.f32.xlu0 %v1080
        %v1082 = vpop.xlane.xlu0 %1081
        %v1083 = vrcp.pop 16.0
        %v1084 = vmul.f32 %v1082, %v1083
        %v1101 = vlaneseq
        %v1102 = vshrl.u32 %v1101, 7
        %v1103 = vsub.s32 %v989, %v1102
        %v1104 = vrot.slane %v941, %v1103
        %v1105 = vlaneseq
        %v1106 = vshrl.u32 %v1105, 7
        %v1107 = vsub.s32 %v994, %v1106
        %v1108 = vrot.slane %v943, %v1107
        %v1109 = vsel %vm999, %v1108, %v1104
        %v1110 = vlaneseq
        %v1111 = vshrl.u32 %v1110, 7
        %v1112 = vsub.s32 %v989, %v1111
        %v1113 = vrot.slane %v945, %v1112
        %v1114 = vlaneseq
        %v1115 = vshrl.u32 %v1114, 7
        %v1116 = vsub.s32 %v994, %v1115
        %v1117 = vrot.slane %v947, %v1116
        %v1118 = vsel %vm999, %v1117, %v1113
        %v1119 = vlaneseq
        %v1120 = vshrl.u32 %v1119, 7
        %v1121 = vsub.s32 %v989, %v1120
        %v1122 = vrot.slane %v949, %v1121
        %v1123 = vlaneseq
        %v1124 = vshrl.u32 %v1123, 7
        %v1125 = vsub.s32 %v994, %v1124
        %v1126 = vrot.slane %v951, %v1125
        %v1127 = vsel %vm999, %v1126, %v1122
        %v1128 = vlaneseq
        %v1129 = vshrl.u32 %v1128, 7
        %v1130 = vsub.s32 %v989, %v1129
        %v1131 = vrot.slane %v953, %v1130
        %v1132 = vlaneseq
        %v1133 = vshrl.u32 %v1132, 7
        %v1134 = vsub.s32 %v994, %v1133
        %v1135 = vrot.slane %v955, %v1134
        %v1136 = vsel %vm999, %v1135, %v1131
        %v1137 = vlaneseq
        %v1138 = vshrl.u32 %v1137, 7
        %v1139 = vsub.s32 %v989, %v1138
        %v1140 = vrot.slane %v957, %v1139
        %v1141 = vlaneseq
        %v1142 = vshrl.u32 %v1141, 7
        %v1143 = vsub.s32 %v994, %v1142
        %v1144 = vrot.slane %v959, %v1143
        %v1145 = vsel %vm999, %v1144, %v1140
        %v1146 = vlaneseq
        %v1147 = vshrl.u32 %v1146, 7
        %v1148 = vsub.s32 %v989, %v1147
        %v1149 = vrot.slane %v961, %v1148
        %v1150 = vlaneseq
        %v1151 = vshrl.u32 %v1150, 7
        %v1152 = vsub.s32 %v994, %v1151
        %v1153 = vrot.slane %v963, %v1152
        %v1154 = vsel %vm999, %v1153, %v1149
        %v1155 = vlaneseq
        %v1156 = vshrl.u32 %v1155, 7
        %v1157 = vsub.s32 %v989, %v1156
        %v1158 = vrot.slane %v965, %v1157
        %v1159 = vlaneseq
        %v1160 = vshrl.u32 %v1159, 7
        %v1161 = vsub.s32 %v994, %v1160
        %v1162 = vrot.slane %v967, %v1161
        %v1163 = vsel %vm999, %v1162, %v1158
        %v1164 = vlaneseq
        %v1165 = vshrl.u32 %v1164, 7
        %v1166 = vsub.s32 %v989, %v1165
        %v1167 = vrot.slane %v969, %v1166
        %v1168 = vlaneseq
        %v1169 = vshrl.u32 %v1168, 7
        %v1170 = vsub.s32 %v994, %v1169
        %v1171 = vrot.slane %v971, %v1170
        %v1172 = vsel %vm999, %v1171, %v1167
        %v1173 = vsel %vm1064, %v1118, %v1109
        %v1174 = vsel %vm1066, %v1127, %v1173
        %v1175 = vsel %vm1068, %v1136, %v1174
        %v1176 = vsel %vm1070, %v1145, %v1175
        %v1177 = vsel %vm1072, %v1154, %v1176
        %v1178 = vsel %vm1074, %v1163, %v1177
        %v1179 = vsel %vm1076, %v1172, %v1178
        %v1181 = vsel %vm1079, %v1179, -inf
        %1182 = vmax.xlane.f32.xlu0 %v1181
        %v1183 = vpop.xlane.xlu0 %1182
        %v1185 = vlaneseq
        %v1186 = vshrl.u32 %v1185, 7
        %v1187 = vsub.s32 0, %v1186
        %v1188 = vrot.slane %v1183, %v1187
        %v1189 = vlaneseq
        %v1190 = vshrl.u32 %v1189, 7
        %v1191 = vsub.s32 1, %v1190
        %v1192 = vrot.slane %v1183, %v1191
        %v1193 = vlaneseq
        %v1194 = vshrl.u32 %v1193, 7
        %v1195 = vsub.s32 2, %v1194
        %v1196 = vrot.slane %v1183, %v1195
        %v1197 = vlaneseq
        %v1198 = vshrl.u32 %v1197, 7
        %v1199 = vsub.s32 3, %v1198
        %v1200 = vrot.slane %v1183, %v1199
        %v1201 = vlaneseq
        %v1202 = vshrl.u32 %v1201, 7
        %v1203 = vsub.s32 4, %v1202
        %v1204 = vrot.slane %v1183, %v1203
        %v1205 = vlaneseq
        %v1206 = vshrl.u32 %v1205, 7
        %v1207 = vsub.s32 5, %v1206
        %v1208 = vrot.slane %v1183, %v1207
        %v1209 = vlaneseq
        %v1210 = vshrl.u32 %v1209, 7
        %v1211 = vsub.s32 6, %v1210
        %v1212 = vrot.slane %v1183, %v1211
        %v1213 = vlaneseq
        %v1214 = vshrl.u32 %v1213, 7
        %v1215 = vsub.s32 7, %v1214
        %v1216 = vrot.slane %v1183, %v1215
        %v1225 = vsub.f32 %v941, %v1188
        %v1226 = vsub.f32 %v943, %v1188
        %v1227 = vsub.f32 %v945, %v1192
        %v1228 = vsub.f32 %v947, %v1192
        %v1229 = vsub.f32 %v949, %v1196
        %v1230 = vsub.f32 %v951, %v1196
        %v1231 = vsub.f32 %v953, %v1200
        %v1232 = vsub.f32 %v955, %v1200
        %v1233 = vsub.f32 %v957, %v1204
        %v1234 = vsub.f32 %v959, %v1204
        %v1235 = vsub.f32 %v961, %v1208
        %v1236 = vsub.f32 %v963, %v1208
        %v1237 = vsub.f32 %v965, %v1212
        %v1238 = vsub.f32 %v967, %v1212
        %v1239 = vsub.f32 %v969, %v1216
        %v1240 = vsub.f32 %v971, %v1216
        %v1241 = vmul.f32 %v1225, 1.442695
        %v1242 = vpow.pop %v1241
        %v1243 = vmul.f32 %v1226, 1.442695
        %v1244 = vpow.pop %v1243
        %v1245 = vmul.f32 %v1227, 1.442695
        %v1246 = vpow.pop %v1245
        %v1247 = vmul.f32 %v1228, 1.442695
        %v1248 = vpow.pop %v1247
        %v1249 = vmul.f32 %v1229, 1.442695
        %v1250 = vpow.pop %v1249
        %v1251 = vmul.f32 %v1230, 1.442695
        %v1252 = vpow.pop %v1251
        %v1253 = vmul.f32 %v1231, 1.442695
        %v1254 = vpow.pop %v1253
        %v1255 = vmul.f32 %v1232, 1.442695
        %v1256 = vpow.pop %v1255
        %v1257 = vmul.f32 %v1233, 1.442695
        %v1258 = vpow.pop %v1257
        %v1259 = vmul.f32 %v1234, 1.442695
        %v1260 = vpow.pop %v1259
        %v1261 = vmul.f32 %v1235, 1.442695
        %v1262 = vpow.pop %v1261
        %v1263 = vmul.f32 %v1236, 1.442695
        %v1264 = vpow.pop %v1263
        %v1265 = vmul.f32 %v1237, 1.442695
        %v1266 = vpow.pop %v1265
        %v1267 = vmul.f32 %v1238, 1.442695
        %v1268 = vpow.pop %v1267
        %v1269 = vmul.f32 %v1239, 1.442695
        %v1270 = vpow.pop %v1269
        %v1271 = vmul.f32 %v1240, 1.442695
        %v1272 = vpow.pop %v1271
        %1289 = vset.pattern.permute.xlu0 0
        %1290 = vperm.xlu0 %1289, %v1242
        %v1291 = vpop.permute.xlu0 %1290
        %1292 = vset.pattern.permute.xlu0 0
        %1293 = vperm.xlu0 %1292, %v1244
        %v1294 = vpop.permute.xlu0 %1293
        %1295 = vset.pattern.permute.xlu0 0
        %1296 = vperm.xlu0 %1295, %v1246
        %v1297 = vpop.permute.xlu0 %1296
        %1298 = vset.pattern.permute.xlu0 0
        %1299 = vperm.xlu0 %1298, %v1248
        %v1300 = vpop.permute.xlu0 %1299
        %1301 = vset.pattern.permute.xlu0 0
        %1302 = vperm.xlu0 %1301, %v1250
        %v1303 = vpop.permute.xlu0 %1302
        %1304 = vset.pattern.permute.xlu0 0
        %1305 = vperm.xlu0 %1304, %v1252
        %v1306 = vpop.permute.xlu0 %1305
        %1307 = vset.pattern.permute.xlu0 0
        %1308 = vperm.xlu0 %1307, %v1254
        %v1309 = vpop.permute.xlu0 %1308
        %1310 = vset.pattern.permute.xlu0 0
        %1311 = vperm.xlu0 %1310, %v1256
        %v1312 = vpop.permute.xlu0 %1311
        %1313 = vset.pattern.permute.xlu0 0
        %1314 = vperm.xlu0 %1313, %v1258
        %v1315 = vpop.permute.xlu0 %1314
        %1316 = vset.pattern.permute.xlu0 0
        %1317 = vperm.xlu0 %1316, %v1260
        %v1318 = vpop.permute.xlu0 %1317
        %1319 = vset.pattern.permute.xlu0 0
        %1320 = vperm.xlu0 %1319, %v1262
        %v1321 = vpop.permute.xlu0 %1320
        %1322 = vset.pattern.permute.xlu0 0
        %1323 = vperm.xlu0 %1322, %v1264
        %v1324 = vpop.permute.xlu0 %1323
        %1325 = vset.pattern.permute.xlu0 0
        %1326 = vperm.xlu0 %1325, %v1266
        %v1327 = vpop.permute.xlu0 %1326
        %1328 = vset.pattern.permute.xlu0 0
        %1329 = vperm.xlu0 %1328, %v1268
        %v1330 = vpop.permute.xlu0 %1329
        %1331 = vset.pattern.permute.xlu0 0
        %1332 = vperm.xlu0 %1331, %v1270
        %v1333 = vpop.permute.xlu0 %1332
        %1334 = vset.pattern.permute.xlu0 0
        %1335 = vperm.xlu0 %1334, %v1272
        %v1336 = vpop.permute.xlu0 %1335
        %v1337 = vlaneseq
        %v1338 = vshrl.u32 %v1337, 7
        %v1339 = vsub.s32 %v989, %v1338
        %v1340 = vrot.slane %v1291, %v1339
        %v1341 = vlaneseq
        %v1342 = vshrl.u32 %v1341, 7
        %v1343 = vsub.s32 %v994, %v1342
        %v1344 = vrot.slane %v1294, %v1343
        %v1345 = vsel %vm999, %v1344, %v1340
        %v1346 = vlaneseq
        %v1347 = vshrl.u32 %v1346, 7
        %v1348 = vsub.s32 %v989, %v1347
        %v1349 = vrot.slane %v1297, %v1348
        %v1350 = vlaneseq
        %v1351 = vshrl.u32 %v1350, 7
        %v1352 = vsub.s32 %v994, %v1351
        %v1353 = vrot.slane %v1300, %v1352
        %v1354 = vsel %vm999, %v1353, %v1349
        %v1355 = vlaneseq
        %v1356 = vshrl.u32 %v1355, 7
        %v1357 = vsub.s32 %v989, %v1356
        %v1358 = vrot.slane %v1303, %v1357
        %v1359 = vlaneseq
        %v1360 = vshrl.u32 %v1359, 7
        %v1361 = vsub.s32 %v994, %v1360
        %v1362 = vrot.slane %v1306, %v1361
        %v1363 = vsel %vm999, %v1362, %v1358
        %v1364 = vlaneseq
        %v1365 = vshrl.u32 %v1364, 7
        %v1366 = vsub.s32 %v989, %v1365
        %v1367 = vrot.slane %v1309, %v1366
        %v1368 = vlaneseq
        %v1369 = vshrl.u32 %v1368, 7
        %v1370 = vsub.s32 %v994, %v1369
        %v1371 = vrot.slane %v1312, %v1370
        %v1372 = vsel %vm999, %v1371, %v1367
        %v1373 = vlaneseq
        %v1374 = vshrl.u32 %v1373, 7
        %v1375 = vsub.s32 %v989, %v1374
        %v1376 = vrot.slane %v1315, %v1375
        %v1377 = vlaneseq
        %v1378 = vshrl.u32 %v1377, 7
        %v1379 = vsub.s32 %v994, %v1378
        %v1380 = vrot.slane %v1318, %v1379
        %v1381 = vsel %vm999, %v1380, %v1376
        %v1382 = vlaneseq
        %v1383 = vshrl.u32 %v1382, 7
        %v1384 = vsub.s32 %v989, %v1383
        %v1385 = vrot.slane %v1321, %v1384
        %v1386 = vlaneseq
        %v1387 = vshrl.u32 %v1386, 7
        %v1388 = vsub.s32 %v994, %v1387
        %v1389 = vrot.slane %v1324, %v1388
        %v1390 = vsel %vm999, %v1389, %v1385
        %v1391 = vlaneseq
        %v1392 = vshrl.u32 %v1391, 7
        %v1393 = vsub.s32 %v989, %v1392
        %v1394 = vrot.slane %v1327, %v1393
        %v1395 = vlaneseq
        %v1396 = vshrl.u32 %v1395, 7
        %v1397 = vsub.s32 %v994, %v1396
        %v1398 = vrot.slane %v1330, %v1397
        %v1399 = vsel %vm999, %v1398, %v1394
        %v1400 = vlaneseq
        %v1401 = vshrl.u32 %v1400, 7
        %v1402 = vsub.s32 %v989, %v1401
        %v1403 = vrot.slane %v1333, %v1402
        %v1404 = vlaneseq
        %v1405 = vshrl.u32 %v1404, 7
        %v1406 = vsub.s32 %v994, %v1405
        %v1407 = vrot.slane %v1336, %v1406
        %v1408 = vsel %vm999, %v1407, %v1403
        %v1409 = vsel %vm1064, %v1354, %v1345
        %v1410 = vsel %vm1066, %v1363, %v1409
        %v1411 = vsel %vm1068, %v1372, %v1410
        %v1412 = vsel %vm1070, %v1381, %v1411
        %v1413 = vsel %vm1072, %v1390, %v1412
        %v1414 = vsel %vm1074, %v1399, %v1413
        %v1415 = vsel %vm1076, %v1408, %v1414
        %v1417 = vsel %vm1079, %v1415, 0.0
        %1418 = vadd.xlane.f32.xlu0 %v1417
        %v1419 = vpop.xlane.xlu0 %1418
        %v1420 = vlog2.pop %v1419
        %v1421 = vmul.f32 %v1420, 0.6931472
        %v1422 = vadd.f32 %v1183, %v1421
        %v1423 = vsub.f32 0.0, %v1084
        %v1424 = vadd.f32 %v1423, %v1422
        %v1425 = vsub.f32 %v1424, 2.7725887
        %v1427 = vlaneseq
        %v1428 = vshrl.u32 %v1427, 7
        %v1429 = vsub.s32 %v989, %v1428
        %v1430 = vrot.slane %v1425, %v1429
        %vm1432 = vcmask 57344
        %1433 = vst.msk [vmem:[%s276] sm:$0x1] %vm1432, %v1430
        %s1434 = sand.u32 %s169, 1
        %s1435 = scalar_lea.sflag [#allocation3], %s1434
        %s1436 = sand.u32 %s169, 1
        %s1437 = scalar_lea.vmem [#allocation2], %s1436
        // Predicated region
        $region45: #{tpu_custom_call.1} parent=43 // pred_check
          %p1438 = pneg %p179
        $region46: #{tpu_custom_call.1} parent=43 // pred_check_branch
          %1440 = sbr.rel (%p1438) target = $region48
        $region47: #{tpu_custom_call.1} parent=43 // pred_region
          %s1442 = ssub.s32 16, 16
          %1443 = vsyncadd %s1435, %s1442
          %s1444 = smul.addr %s20, 16
          %s1445 = scalar_lea.hbm %s6, %s1444
          %s1447 = sshll.u32 %s1437, 4
          %s1448 = int_to_ptr.vmem [resolvable:$true] %s1447
          %1450 = dma.vmem_to_hbm [thread:$0]  %s1448, 16, %s1445, %s1435
        $region48: #{tpu_custom_call.1} parent=43 // pred_fallthru
          _
      $region44: #{tpu_custom_call.1} parent=5 // pred_fallthru
        _
      %p1451 = scmp.le.s32.totalorder 2, %s15
      // Predicated region
      $region49: #{tpu_custom_call.1} parent=5 // pred_check
        %p1452 = pneg %p1451
      $region50: #{tpu_custom_call.1} parent=5 // pred_check_branch
        %1454 = sbr.rel (%p1452) target = $region52
      $region51: #{tpu_custom_call.1} parent=5 // pred_region
        %s1455 = ssub.s32 %s15, 2
        // Predicated region
        $region53: #{tpu_custom_call.1} parent=51 // pred_check
          %p1456 = pneg %p185
        $region54: #{tpu_custom_call.1} parent=51 // pred_check_branch
          %1458 = sbr.rel (%p1456) target = $region56
        $region55: #{tpu_custom_call.1} parent=51 // pred_region
          %s1459 = sand.u32 %s170, 1
          %s1460 = scalar_lea.sflag [#allocation3], %s1459
          %s1461 = sand.u32 %s170, 1
          %s1462 = scalar_lea.vmem [#allocation2], %s1461
          %1463 = dma.done %s1460, 16
        $region56: #{tpu_custom_call.1} parent=51 // pred_fallthru
          _
      $region52: #{tpu_custom_call.1} parent=5 // pred_fallthru
        _
    $region6: #{tpu_custom_call.1} parent=1 // loop_footer
      %s19 = sadd.s32 1, %s15
    $region7: #{tpu_custom_call.1} parent=1 // loop_footer_branch
      %14 = sbr.rel target = $region3
    $region8: #{tpu_custom_call.1} parent=1 // loop_exit
      _
    %1464 = vsyncpa [#allocation3], 1
    %s1465 = scalar_lea.sflag [#allocation3], 1
    %1466 = vsyncpa %s1465, 1

</llo_original>
